<compile_context>
chip_gen: v7x
topology: tpu7x:2x2x1
jax: 0.10.0
libtpu: 0.0.40
codegen_flags: <defaults>
</compile_context>

<pallas_src>
import functools
import math

import jax
import jax.numpy as jnp
from jax.experimental import pallas as pl
from jax.experimental.pallas import tpu as pltpu


_MXU_DTYPE = jnp.bfloat16   # MXU operand dtype (weights are stored in this dtype)
_ACT_DTYPE = jnp.float32    # inter-kernel activation dtype (bf16 is a further win on v5e)
_LN_EPS = 1e-5              # torch.nn.LayerNorm default
_NEG_INF = -1e9


def _vmem_limit_bytes():
    """Per-generation scoped-VMEM limit: 3/4 of physical, capped at 96 MiB.

    v5e/v6e (128 MiB physical) -> 96 MiB; v7x (64 MiB physical) -> 48 MiB.
    """
    try:
        cap = pltpu.get_tpu_info().vmem_capacity_bytes
        return int(min(cap * 3 // 4, 96 * 1024 * 1024))
    except Exception:
        return 32 * 1024 * 1024  # conservative fallback


_VMEM_LIMIT = _vmem_limit_bytes()


def _choose_block(dim, target, align):
    """Block size for `dim`: the full dim if small, otherwise the largest divisor of
    `dim` that is a multiple of `align` and <= target (fallback: full dim).  All dims
    fed to this function are either small or padded to a multiple of 128 at init, so
    the fallback never produces an oversized weight block."""
    if dim <= target:
        return dim
    for cand in range(min(target, dim), align - 1, -1):
        if dim % cand == 0 and cand % align == 0:
            return cand
    return dim


def _compiler_params(semantics):
    return pltpu.CompilerParams(
        dimension_semantics=semantics, vmem_limit_bytes=_VMEM_LIMIT
    )


# ----------------------------------------------------------------------------
# Tiled linear kernels (optionally fused with ReLU / residual add)
# ----------------------------------------------------------------------------
def _linear_kernel(x_ref, w_ref, b_ref, o_ref, acc_ref, *, activation):
    @pl.when(pl.program_id(2) == 0)
    def _():
        acc_ref[...] = jnp.zeros_like(acc_ref)

    acc_ref[...] += jnp.dot(
        x_ref[...].astype(_MXU_DTYPE),
        w_ref[...].astype(_MXU_DTYPE),
        preferred_element_type=jnp.float32,
    )

    @pl.when(pl.program_id(2) == pl.num_programs(2) - 1)
    def _():
        y = acc_ref[...] + b_ref[...]
        if activation == "relu":
            y = jnp.maximum(y, 0.0)
        o_ref[...] = y.astype(o_ref.dtype)


def _linear_residual_kernel(x_ref, w_ref, b_ref, r_ref, o_ref, acc_ref):
    @pl.when(pl.program_id(2) == 0)
    def _():
        acc_ref[...] = jnp.zeros_like(acc_ref)

    acc_ref[...] += jnp.dot(
        x_ref[...].astype(_MXU_DTYPE),
        w_ref[...].astype(_MXU_DTYPE),
        preferred_element_type=jnp.float32,
    )

    @pl.when(pl.program_id(2) == pl.num_programs(2) - 1)
    def _():
        o_ref[...] = (acc_ref[...] + b_ref[...] + r_ref[...]).astype(o_ref.dtype)


def linear(x2d, w, b, activation=None, residual=None,
           tm_target=512, tn_target=512, tk_target=512):
    """Tiled y = act(x @ w + b) [+ residual]."""
    M, K = x2d.shape
    N = w.shape[1]
    tm = _choose_block(M, tm_target, 8)
    tn = _choose_block(N, tn_target, 128)
    tk = _choose_block(K, tk_target, 128)
    grid = (M // tm, N // tn, K // tk)

    in_specs = [
        pl.BlockSpec((tm, tk), lambda i, j, k: (i, k)),
        pl.BlockSpec((tk, tn), lambda i, j, k: (k, j)),
        pl.BlockSpec((1, tn), lambda i, j, k: (0, j)),
    ]
    args = [x2d, w, b.reshape(1, N)]
    if residual is None:
        kernel = functools.partial(_linear_kernel, activation=activation)
    else:
        assert activation is None
        in_specs.append(pl.BlockSpec((tm, tn), lambda i, j, k: (i, j)))
        args.append(residual)
        kernel = _linear_residual_kernel

    return pl.pallas_call(
        kernel,
        out_shape=jax.ShapeDtypeStruct((M, N), _ACT_DTYPE),
        grid=grid,
        in_specs=in_specs,
        out_specs=pl.BlockSpec((tm, tn), lambda i, j, k: (i, j)),
        scratch_shapes=[pltpu.VMEM((tm, tn), jnp.float32)],
        compiler_params=_compiler_params(("parallel", "parallel", "arbitrary")),
    )(*args)


# ----------------------------------------------------------------------------
# Fused LayerNorm -> Linear (LN computed once per row tile, reused over N tiles)
# ----------------------------------------------------------------------------
def _ln_linear_kernel(x_ref, g_ref, bl_ref, w_ref, b_ref, o_ref, h_ref,
                      *, activation, eps):
    # LayerNorm only at the first N-tile of each row tile; result cached in VMEM
    # scratch (already cast to the MXU dtype) and reused for every N tile.
    @pl.when(pl.program_id(1) == 0)
    def _():
        x = x_ref[...].astype(jnp.float32)
        mu = jnp.mean(x, axis=-1, keepdims=True)
        var = jnp.mean((x - mu) ** 2, axis=-1, keepdims=True)
        h = (x - mu) * jax.lax.rsqrt(var + eps)
        h = h * g_ref[...] + bl_ref[...]
        h_ref[...] = h.astype(h_ref.dtype)

    y = jnp.dot(
        h_ref[...], w_ref[...].astype(_MXU_DTYPE),
        preferred_element_type=jnp.float32,
    ) + b_ref[...]
    if activation == "relu":
        y = jnp.maximum(y, 0.0)
    o_ref[...] = y.astype(o_ref.dtype)


def ln_linear(x2d, g, bln, w, b, activation=None, tm_target=512, tn_target=512):
    """Fused y = act(LayerNorm(x) @ w + b). K (= d_model) is kept whole per block."""
    # TODO(synk): add a K-tiled fallback (LN precomputed into scratch, then accumulate
    #             over K tiles) for d_model >= 4096 so the (tm,D)+(D,tn) working set
    #             fits v7x's 64 MiB VMEM.
    M, D = x2d.shape
    N = w.shape[1]
    tm = _choose_block(M, tm_target, 8)
    tn = _choose_block(N, tn_target, 128)
    grid = (M // tm, N // tn)
    return pl.pallas_call(
        functools.partial(_ln_linear_kernel, activation=activation, eps=_LN_EPS),
        out_shape=jax.ShapeDtypeStruct((M, N), _ACT_DTYPE),
        grid=grid,
        in_specs=[
            pl.BlockSpec((tm, D), lambda i, j: (i, 0)),
            pl.BlockSpec((1, D), lambda i, j: (0, 0)),
            pl.BlockSpec((1, D), lambda i, j: (0, 0)),
            pl.BlockSpec((D, tn), lambda i, j: (0, j)),
            pl.BlockSpec((1, tn), lambda i, j: (0, j)),
        ],
        out_specs=pl.BlockSpec((tm, tn), lambda i, j: (i, j)),
        scratch_shapes=[pltpu.VMEM((tm, D), _MXU_DTYPE)],
        compiler_params=_compiler_params(("parallel", "arbitrary")),
    )(x2d, g.reshape(1, D), bln.reshape(1, D), w, b.reshape(1, N))


# ----------------------------------------------------------------------------
# Standalone LayerNorm (final encoder / decoder norms)
# ----------------------------------------------------------------------------
def _layernorm_kernel(x_ref, g_ref, b_ref, o_ref, *, eps):
    x = x_ref[...].astype(jnp.float32)
    mu = jnp.mean(x, axis=-1, keepdims=True)
    var = jnp.mean((x - mu) ** 2, axis=-1, keepdims=True)
    y = (x - mu) * jax.lax.rsqrt(var + eps)
    o_ref[...] = (y * g_ref[...] + b_ref[...]).astype(o_ref.dtype)


def layer_norm(x, g, b, tm_target=512):
    B, S, D = x.shape
    M = B * S
    x2d = x.reshape(M, D)
    tm = _choose_block(M, tm_target, 8)
    out = pl.pallas_call(
        functools.partial(_layernorm_kernel, eps=_LN_EPS),
        out_shape=jax.ShapeDtypeStruct((M, D), _ACT_DTYPE),
        grid=(M // tm,),
        in_specs=[
            pl.BlockSpec((tm, D), lambda i: (i, 0)),
            pl.BlockSpec((1, D), lambda i: (0, 0)),
            pl.BlockSpec((1, D), lambda i: (0, 0)),
        ],
        out_specs=pl.BlockSpec((tm, D), lambda i: (i, 0)),
        compiler_params=_compiler_params(("parallel",)),
    )(x2d, g.reshape(1, D), b.reshape(1, D))
    return out.reshape(B, S, D)


# ----------------------------------------------------------------------------
# Attention: one grid step per batch; per-key mask + in-kernel causal mask;
# per-head outputs stored directly into the lane-dense (S, D) output block.
# ----------------------------------------------------------------------------
# TODO(synk): for long sequences, add a KV grid axis with online-softmax (flash-style)
#             m/l/acc scratch so only (tq, Dh)/(tk, Dh) tiles are VMEM-resident.
# TODO(synk): with Dh < 128 the per-head column slices are lane-masked; reorder the
#             fused QKV columns / prefer Dh >= 128 configs for full MXU utilization.
def _attn_head(q, k, v, mask_add, scale):
    # scores = q @ k^T (contraction over head dim, no explicit transpose)
    s = jax.lax.dot_general(
        q, k, (((1,), (1,)), ((), ())), preferred_element_type=jnp.float32
    ) * scale + mask_add
    s = s - jnp.max(s, axis=-1, keepdims=True)
    p = jnp.exp(s)
    p = p * pl.reciprocal(jnp.sum(p, axis=-1, keepdims=True), approx=True)
    return jnp.dot(p.astype(_MXU_DTYPE), v, preferred_element_type=jnp.float32)


def _self_attention_kernel(qkv_ref, kmask_ref, o_ref, *, n_heads, scale, causal):
    # qkv_ref: (1, S, 3D); kmask_ref: (1, 1, S) additive per-key; o_ref: (1, S, D)
    S = o_ref.shape[1]
    D = o_ref.shape[2]
    Dh = D // n_heads
    qkv = qkv_ref[0]
    mask_add = kmask_ref[0]                         # (1, S) broadcasts over query rows
    if causal:
        row = jax.lax.broadcasted_iota(jnp.int32, (S, S), 0)
        col = jax.lax.broadcasted_iota(jnp.int32, (S, S), 1)
        mask_add = mask_add + jnp.where(col <= row, 0.0, _NEG_INF).astype(jnp.float32)
    for h in range(n_heads):
        q = qkv[:, h * Dh:(h + 1) * Dh].astype(_MXU_DTYPE)
        k = qkv[:, D + h * Dh:D + (h + 1) * Dh].astype(_MXU_DTYPE)
        v = qkv[:, 2 * D + h * Dh:2 * D + (h + 1) * Dh].astype(_MXU_DTYPE)
        ctx = _attn_head(q, k, v, mask_add, scale)
        o_ref[0, :, h * Dh:(h + 1) * Dh] = ctx.astype(o_ref.dtype)


def _cross_attention_kernel(q_ref, kv_ref, kmask_ref, o_ref, *, n_heads, scale):
    # q_ref: (1, Sq, D); kv_ref: (1, Sk, 2D); kmask_ref: (1, 1, Sk); o_ref: (1, Sq, D)
    D = o_ref.shape[2]
    Dh = D // n_heads
    qh = q_ref[0]
    kv = kv_ref[0]
    mask_add = kmask_ref[0]                         # (1, Sk) broadcasts over query rows
    for h in range(n_heads):
        q = qh[:, h * Dh:(h + 1) * Dh].astype(_MXU_DTYPE)
        k = kv[:, h * Dh:(h + 1) * Dh].astype(_MXU_DTYPE)
        v = kv[:, D + h * Dh:D + (h + 1) * Dh].astype(_MXU_DTYPE)
        ctx = _attn_head(q, k, v, mask_add, scale)
        o_ref[0, :, h * Dh:(h + 1) * Dh] = ctx.astype(o_ref.dtype)


def self_attention(qkv, key_mask_add, n_heads, scale, causal):
    B, S, threeD = qkv.shape
    D = threeD // 3
    return pl.pallas_call(
        functools.partial(_self_attention_kernel, n_heads=n_heads, scale=scale,
                          causal=causal),
        out_shape=jax.ShapeDtypeStruct((B, S, D), _ACT_DTYPE),
        grid=(B,),
        in_specs=[
            pl.BlockSpec((1, S, threeD), lambda b: (b, 0, 0)),
            pl.BlockSpec((1, 1, S), lambda b: (b, 0, 0)),
        ],
        out_specs=pl.BlockSpec((1, S, D), lambda b: (b, 0, 0)),
        compiler_params=_compiler_params(("parallel",)),
    )(qkv, key_mask_add)


def cross_attention(q, kv, key_mask_add, n_heads, scale):
    B, Sq, D = q.shape
    Sk = kv.shape[1]
    return pl.pallas_call(
        functools.partial(_cross_attention_kernel, n_heads=n_heads, scale=scale),
        out_shape=jax.ShapeDtypeStruct((B, Sq, D), _ACT_DTYPE),
        grid=(B,),
        in_specs=[
            pl.BlockSpec((1, Sq, D), lambda b: (b, 0, 0)),
            pl.BlockSpec((1, Sk, 2 * D), lambda b: (b, 0, 0)),
            pl.BlockSpec((1, 1, Sk), lambda b: (b, 0, 0)),
        ],
        out_specs=pl.BlockSpec((1, Sq, D), lambda b: (b, 0, 0)),
        compiler_params=_compiler_params(("parallel",)),
    )(q, kv, key_mask_add)


# ----------------------------------------------------------------------------
# Fused vocab projection + log_softmax (K-tiled, full padded vocab per row tile)
# ----------------------------------------------------------------------------
# TODO(synk): for very large vocabularies (V_pad * tm too big for VMEM), switch to an
#             online logsumexp over vocab tiles with (tm,1) m/l scratch.
def _proj_logsoftmax_kernel(x_ref, w_ref, b_ref, o_ref, acc_ref, *, valid_n):
    @pl.when(pl.program_id(1) == 0)
    def _():
        acc_ref[...] = jnp.zeros_like(acc_ref)

    acc_ref[...] += jnp.dot(
        x_ref[...].astype(_MXU_DTYPE),
        w_ref[...].astype(_MXU_DTYPE),
        preferred_element_type=jnp.float32,
    )

    @pl.when(pl.program_id(1) == pl.num_programs(1) - 1)
    def _():
        y = acc_ref[...] + b_ref[...]
        lane = jax.lax.broadcasted_iota(jnp.int32, y.shape, 1)
        y = jnp.where(lane < valid_n, y, _NEG_INF)      # mask padded vocab lanes
        y = y - jnp.max(y, axis=-1, keepdims=True)
        lse = jnp.log(jnp.sum(jnp.exp(y), axis=-1, keepdims=True))
        o_ref[...] = (y - lse).astype(o_ref.dtype)


def project_logsoftmax(x2d, w, b, valid_n, tm_target=256, tk_target=512):
    M, K = x2d.shape
    Vp = w.shape[1]
    # bound rows-per-block so (acc + double-buffered in/out) stays inside VMEM
    cap = max(8, ((_VMEM_LIMIT // 6) // (Vp * 4)) // 8 * 8)
    tm = _choose_block(M, min(tm_target, cap), 8)
    tk = _choose_block(K, tk_target, 128)
    grid = (M // tm, K // tk)
    return pl.pallas_call(
        functools.partial(_proj_logsoftmax_kernel, valid_n=valid_n),
        out_shape=jax.ShapeDtypeStruct((M, Vp), jnp.float32),
        grid=grid,
        in_specs=[
            pl.BlockSpec((tm, tk), lambda i, k: (i, k)),
            pl.BlockSpec((tk, Vp), lambda i, k: (k, 0)),
            pl.BlockSpec((1, Vp), lambda i, k: (0, 0)),
        ],
        out_specs=pl.BlockSpec((tm, Vp), lambda i, k: (i, 0)),
        scratch_shapes=[pltpu.VMEM((tm, Vp), jnp.float32)],
        compiler_params=_compiler_params(("parallel", "arbitrary")),
    )(x2d, w, b.reshape(1, Vp))


# ----------------------------------------------------------------------------
# Model building blocks (glue in plain JAX, hot paths in Pallas)
# ----------------------------------------------------------------------------
def decompose_mask(mask, B, Sk):
    """Decompose a boolean attention mask into (per-key additive mask (B,1,Sk), causal).

    Supports the standard cases: None, padding mask (B,1,1,Sk), and the usual
    causal-and-padding decoder mask (B,1,Sq,Sk) whose last query row carries the
    padding component.
    """
    # TODO(synk): truly arbitrary (non padding/causal) masks are not representable in
    #             this compact form; extend the kernels with a full-mask path if needed.
    if mask is None:
        return jnp.zeros((B, 1, Sk), jnp.float32), False
    m = jnp.asarray(mask).astype(jnp.bool_).reshape(B, -1, Sk)
    causal = m.shape[1] > 1
    key_row = m[:, -1, :]
    add = jnp.where(key_row, 0.0, _NEG_INF).astype(jnp.float32)
    return add.reshape(B, 1, Sk), causal


def encoder_block(x, key_mask_add, causal, p, n_heads):
    B, S, D = x.shape
    scale = 1.0 / math.sqrt(D // n_heads)
    # self-attention sublayer: LN fused into the QKV projection, residual fused into wo
    qkv = ln_linear(x.reshape(B * S, D), p["ln1_g"], p["ln1_b"],
                    p["attn"]["wqkv"], p["attn"]["bqkv"]).reshape(B, S, 3 * D)
    ctx = self_attention(qkv, key_mask_add, n_heads, scale, causal)
    x = linear(ctx.reshape(B * S, D), p["attn"]["wo"], p["attn"]["bo"],
               residual=x.reshape(B * S, D)).reshape(B, S, D)
    # feed-forward sublayer: LN fused into w1 (+ReLU), residual fused into w2
    h = ln_linear(x.reshape(B * S, D), p["ln2_g"], p["ln2_b"],
                  p["ffn"]["w1"], p["ffn"]["b1"], activation="relu")
    x = linear(h, p["ffn"]["w2"], p["ffn"]["b2"],
               residual=x.reshape(B * S, D)).reshape(B, S, D)
    return x


def decoder_block(y, enc_out, enc_key_add, dec_key_add, dec_causal, p, n_heads):
    B, Sq, D = y.shape
    Sk = enc_out.shape[1]
    scale = 1.0 / math.sqrt(D // n_heads)
    # masked self-attention
    qkv = ln_linear(y.reshape(B * Sq, D), p["ln1_g"], p["ln1_b"],
                    p["self_attn"]["wqkv"], p["self_attn"]["bqkv"]).reshape(B, Sq, 3 * D)
    ctx = self_attention(qkv, dec_key_add, n_heads, scale, dec_causal)
    y = linear(ctx.reshape(B * Sq, D), p["self_attn"]["wo"], p["self_attn"]["bo"],
               residual=y.reshape(B * Sq, D)).reshape(B, Sq, D)
    # cross-attention (fused KV projection of the encoder output)
    q = ln_linear(y.reshape(B * Sq, D), p["ln2_g"], p["ln2_b"],
                  p["cross_attn"]["wq"], p["cross_attn"]["bq"]).reshape(B, Sq, D)
    kv = linear(enc_out.reshape(B * Sk, D), p["cross_attn"]["wkv"],
                p["cross_attn"]["bkv"]).reshape(B, Sk, 2 * D)
    ctx = cross_attention(q, kv, enc_key_add, n_heads, scale)
    y = linear(ctx.reshape(B * Sq, D), p["cross_attn"]["wo"], p["cross_attn"]["bo"],
               residual=y.reshape(B * Sq, D)).reshape(B, Sq, D)
    # feed-forward
    h = ln_linear(y.reshape(B * Sq, D), p["ln3_g"], p["ln3_b"],
                  p["ffn"]["w1"], p["ffn"]["b1"], activation="relu")
    y = linear(h, p["ffn"]["w2"], p["ffn"]["b2"],
               residual=y.reshape(B * Sq, D)).reshape(B, Sq, D)
    return y


def positional_embedding(ids, emb_table, pe, d_model):
    # embedding gather + PE add is glue (not a Pallas hot path); dropout = identity
    x = emb_table[ids] * math.sqrt(d_model)
    return (x + pe[None, : ids.shape[1], :]).astype(_ACT_DTYPE)


def transformer_forward(params, src, tgt, encoder_mask=None, decoder_mask=None):
    cfg = params["cfg"]
    D, H, V = cfg["d_model"], cfg["n_heads"], cfg["vocab_tgt"]
    B, Ss = src.shape
    St = tgt.shape[1]

    enc_key_add, enc_causal = decompose_mask(encoder_mask, B, Ss)
    dec_key_add, dec_causal = decompose_mask(decoder_mask, B, St)

    # encode
    x = positional_embedding(src, params["src_emb"], params["pe"], D)
    for lp in params["enc_layers"]:
        x = encoder_block(x, enc_key_add, enc_causal, lp, H)
    enc_out = layer_norm(x, params["enc_norm_g"], params["enc_norm_b"])

    # decode
    y = positional_embedding(tgt, params["tgt_emb"], params["pe"], D)
    for lp in params["dec_layers"]:
        y = decoder_block(y, enc_out, enc_key_add, dec_key_add, dec_causal, lp, H)
    dec_out = layer_norm(y, params["dec_norm_g"], params["dec_norm_b"])

    # fused vocab projection + log_softmax (padded vocab lanes sliced off)
    logp = project_logsoftmax(dec_out.reshape(B * St, D),
                              params["proj_w"], params["proj_b"], valid_n=V)
    return logp[:, :V].reshape(B, St, V)


# ----------------------------------------------------------------------------
# Deterministic parameter initialization (xavier_uniform for dim > 1 params)
# ----------------------------------------------------------------------------
def init_params(key, *, vocab_src, vocab_tgt, d_model, d_ff, n_heads, n_layers, max_len):
    keys = iter(jax.random.split(key, 512))

    def xavier(shape):
        fan_in, fan_out = shape[0], shape[1]
        lim = math.sqrt(6.0 / (fan_in + fan_out))
        return jax.random.uniform(next(keys), shape, jnp.float32, -lim, lim)

    def w(shape):
        return xavier(shape).astype(_MXU_DTYPE)   # weights stored bf16 for the MXU

    def self_attn_params():
        wq, wk, wv = (xavier((d_model, d_model)) for _ in range(3))
        return {
            "wqkv": jnp.concatenate([wq, wk, wv], axis=1).astype(_MXU_DTYPE),
            "bqkv": jnp.zeros((3 * d_model,), jnp.float32),
            "wo": w((d_model, d_model)),
            "bo": jnp.zeros((d_model,), jnp.float32),
        }

    def cross_attn_params():
        wq, wk, wv = (xavier((d_model, d_model)) for _ in range(3))
        return {
            "wq": wq.astype(_MXU_DTYPE), "bq": jnp.zeros((d_model,), jnp.float32),
            "wkv": jnp.concatenate([wk, wv], axis=1).astype(_MXU_DTYPE),
            "bkv": jnp.zeros((2 * d_model,), jnp.float32),
            "wo": w((d_model, d_model)),
            "bo": jnp.zeros((d_model,), jnp.float32),
        }

    def ffn_params():
        return {
            "w1": w((d_model, d_ff)), "b1": jnp.zeros((d_ff,), jnp.float32),
            "w2": w((d_ff, d_model)), "b2": jnp.zeros((d_model,), jnp.float32),
        }

    def ln():
        return jnp.ones((d_model,), jnp.float32), jnp.zeros((d_model,), jnp.float32)

    def enc_layer():
        g1, b1 = ln(); g2, b2 = ln()
        return {"attn": self_attn_params(), "ffn": ffn_params(),
                "ln1_g": g1, "ln1_b": b1, "ln2_g": g2, "ln2_b": b2}

    def dec_layer():
        g1, b1 = ln(); g2, b2 = ln(); g3, b3 = ln()
        return {"self_attn": self_attn_params(), "cross_attn": cross_attn_params(),
                "ffn": ffn_params(),
                "ln1_g": g1, "ln1_b": b1, "ln2_g": g2, "ln2_b": b2,
                "ln3_g": g3, "ln3_b": b3}

    # sinusoidal positional encoding table
    pos = jnp.arange(max_len, dtype=jnp.float32)[:, None]
    div = jnp.exp(jnp.arange(0, d_model, 2, dtype=jnp.float32)
                  * (-math.log(10000.0) / d_model))
    pe = jnp.zeros((max_len, d_model), jnp.float32)
    pe = pe.at[:, 0::2].set(jnp.sin(pos * div))
    pe = pe.at[:, 1::2].set(jnp.cos(pos * div))

    # vocab projection padded to a lane-dense multiple of 128
    v_pad = ((vocab_tgt + 127) // 128) * 128
    proj_w = jnp.pad(xavier((d_model, vocab_tgt)),
                     ((0, 0), (0, v_pad - vocab_tgt))).astype(_MXU_DTYPE)
    proj_b = jnp.zeros((v_pad,), jnp.float32)

    enc_g, enc_b = ln()
    dec_g, dec_b = ln()
    return {
        "cfg": {"d_model": d_model, "n_heads": n_heads, "vocab_tgt": vocab_tgt},
        "src_emb": xavier((vocab_src, d_model)),
        "tgt_emb": xavier((vocab_tgt, d_model)),
        "pe": pe,
        "enc_layers": [enc_layer() for _ in range(n_layers)],
        "dec_layers": [dec_layer() for _ in range(n_layers)],
        "enc_norm_g": enc_g, "enc_norm_b": enc_b,
        "dec_norm_g": dec_g, "dec_norm_b": dec_b,
        "proj_w": proj_w,
        "proj_b": proj_b,
    }


# ----------------------------------------------------------------------------
if __name__ == "__main__":
    B, S = 2, 8
    d_model, d_ff, n_heads, n_layers = 32, 64, 4, 2
    vocab_src, vocab_tgt = 50, 50

    root = jax.random.PRNGKey(0)
    k_params, k_src, k_tgt = jax.random.split(root, 3)

    params = init_params(
        k_params, vocab_src=vocab_src, vocab_tgt=vocab_tgt, d_model=d_model,
        d_ff=d_ff, n_heads=n_heads, n_layers=n_layers, max_len=64,
    )

    src = jax.random.randint(k_src, (B, S), 0, vocab_src, dtype=jnp.int32)
    tgt = jax.random.randint(k_tgt, (B, S), 0, vocab_tgt, dtype=jnp.int32)
    encoder_mask = jnp.ones((B, 1, 1, S), dtype=jnp.bool_)  # no padding
    decoder_mask = jnp.broadcast_to(
        jnp.tril(jnp.ones((S, S), jnp.bool_))[None, None], (B, 1, S, S)
    )

    out = transformer_forward(params, src, tgt, encoder_mask, decoder_mask)
    out = jax.block_until_ready(out)
    assert out.shape == (B, S, vocab_tgt)
    assert bool(jnp.all(jnp.isfinite(out)))
    print("KERNEL_OK")
</pallas_src>

<mosaic_0001>
module attributes {stable_mosaic.version = 11 : i64} {
  func.func @_ln_linear_kernel(%arg0: i32, %arg1: i32, %arg2: memref<16x32xf32, #tpu.memory_space<vmem>>, %arg3: memref<1x32xf32, #tpu.memory_space<vmem>>, %arg4: memref<1x32xf32, #tpu.memory_space<vmem>>, %arg5: memref<32x96xbf16, #tpu.memory_space<vmem>>, %arg6: memref<1x96xf32, #tpu.memory_space<vmem>>, %arg7: memref<16x96xf32, #tpu.memory_space<vmem>>, %arg8: memref<16x32xbf16, #tpu.memory_space<vmem>>) attributes {dimension_semantics = [#tpu.dimension_semantics<parallel>, #tpu.dimension_semantics<arbitrary>], iteration_bounds = array<i64: 1, 1>, scalar_prefetch = 0 : i64, scratch_operands = 1 : i64, tpu.core_type = #tpu.core_type<tc>, window_params = [{transform_indices = @transform_0, window_bounds = array<i64: 16, 32>}, {pipeline_mode = #tpu.pipeline_mode<synchronous>, transform_indices = @transform_1, window_bounds = array<i64: 1, 32>}, {pipeline_mode = #tpu.pipeline_mode<synchronous>, transform_indices = @transform_2, window_bounds = array<i64: 1, 32>}, {transform_indices = @transform_3, window_bounds = array<i64: 32, 96>}, {transform_indices = @transform_4, window_bounds = array<i64: 1, 96>}, {transform_indices = @transform_5, window_bounds = array<i64: 16, 96>}]} {
    %c0_i32 = arith.constant 0 : i32
    %0 = arith.cmpi eq, %arg1, %c0_i32 : i32
    %1 = arith.extui %0 : i1 to i32
    %c0_i32_0 = arith.constant 0 : i32
    %2 = arith.cmpi ne, %1, %c0_i32_0 : i32
    scf.if %2 {
      %c0_8 = arith.constant 0 : index
      %c0_9 = arith.constant 0 : index
      %10 = vector.load %arg2[%c0_8, %c0_9] : memref<16x32xf32, #tpu.memory_space<vmem>>, vector<16x32xf32>
      %cst_10 = arith.constant dense<0.000000e+00> : vector<16xf32>
      %11 = vector.multi_reduction <add>, %10, %cst_10 [1] : vector<16x32xf32> to vector<16xf32>
      %12 = vector.shape_cast %11 : vector<16xf32> to vector<16x1xf32>
      %cst_11 = arith.constant 3.200000e+01 : f32
      %13 = vector.broadcast %cst_11 : f32 to vector<16x1xf32>
      %14 = arith.divf %12, %13 : vector<16x1xf32>
      %15 = vector.broadcast %14 : vector<16x1xf32> to vector<16x32xf32>
      %16 = arith.subf %10, %15 : vector<16x32xf32>
      %17 = arith.mulf %16, %16 : vector<16x32xf32>
      %cst_12 = arith.constant dense<0.000000e+00> : vector<16xf32>
      %18 = vector.multi_reduction <add>, %17, %cst_12 [1] : vector<16x32xf32> to vector<16xf32>
      %19 = vector.shape_cast %18 : vector<16xf32> to vector<16x1xf32>
      %cst_13 = arith.constant 3.200000e+01 : f32
      %20 = vector.broadcast %cst_13 : f32 to vector<16x1xf32>
      %21 = arith.divf %19, %20 : vector<16x1xf32>
      %22 = vector.broadcast %14 : vector<16x1xf32> to vector<16x32xf32>
      %23 = arith.subf %10, %22 : vector<16x32xf32>
      %cst_14 = arith.constant 9.99999974E-6 : f32
      %24 = vector.broadcast %cst_14 : f32 to vector<16x1xf32>
      %25 = arith.addf %21, %24 : vector<16x1xf32>
      %26 = math.rsqrt %25 : vector<16x1xf32>
      %27 = vector.broadcast %26 : vector<16x1xf32> to vector<16x32xf32>
      %28 = arith.mulf %23, %27 : vector<16x32xf32>
      %c0_15 = arith.constant 0 : index
      %c0_16 = arith.constant 0 : index
      %29 = vector.load %arg3[%c0_15, %c0_16] : memref<1x32xf32, #tpu.memory_space<vmem>>, vector<1x32xf32>
      %30 = vector.broadcast %29 : vector<1x32xf32> to vector<16x32xf32>
      %31 = arith.mulf %28, %30 : vector<16x32xf32>
      %c0_17 = arith.constant 0 : index
      %c0_18 = arith.constant 0 : index
      %32 = vector.load %arg4[%c0_17, %c0_18] : memref<1x32xf32, #tpu.memory_space<vmem>>, vector<1x32xf32>
      %33 = vector.broadcast %32 : vector<1x32xf32> to vector<16x32xf32>
      %34 = arith.addf %31, %33 : vector<16x32xf32>
      %35 = arith.truncf %34 : vector<16x32xf32> to vector<16x32xbf16>
      %c0_19 = arith.constant 0 : index
      %c0_20 = arith.constant 0 : index
      %36 = vector.load %arg8[%c0_19, %c0_20] : memref<16x32xbf16, #tpu.memory_space<vmem>>, vector<16x32xbf16>
      tpu.vector_store %arg8[%c0_19, %c0_20], %35 {strides = array<i32>} : memref<16x32xbf16, #tpu.memory_space<vmem>>, vector<16x32xbf16>,
    } else {
    }
    %c0 = arith.constant 0 : index
    %c0_1 = arith.constant 0 : index
    %3 = vector.load %arg8[%c0, %c0_1] : memref<16x32xbf16, #tpu.memory_space<vmem>>, vector<16x32xbf16>
    %c0_2 = arith.constant 0 : index
    %c0_3 = arith.constant 0 : index
    %4 = vector.load %arg5[%c0_2, %c0_3] : memref<32x96xbf16, #tpu.memory_space<vmem>>, vector<32x96xbf16>
    %cst = arith.constant dense<0.000000e+00> : vector<16x96xf32>
    %5 = tpu.matmul %3, %4, %cst {dimension_numbers = #tpu.dot_dimension_numbers<[1], [0], [0], [1], [0, 0, 1, 1], [], []>} : vector<16x32xbf16>, vector<32x96xbf16>, vector<16x96xf32> -> vector<16x96xf32>
    %c0_4 = arith.constant 0 : index
    %c0_5 = arith.constant 0 : index
    %6 = vector.load %arg6[%c0_4, %c0_5] : memref<1x96xf32, #tpu.memory_space<vmem>>, vector<1x96xf32>
    %7 = vector.broadcast %6 : vector<1x96xf32> to vector<16x96xf32>
    %8 = arith.addf %5, %7 : vector<16x96xf32>
    %c0_6 = arith.constant 0 : index
    %c0_7 = arith.constant 0 : index
    %9 = vector.load %arg7[%c0_6, %c0_7] : memref<16x96xf32, #tpu.memory_space<vmem>>, vector<16x96xf32>
    tpu.vector_store %arg7[%c0_6, %c0_7], %8 {strides = array<i32>} : memref<16x96xf32, #tpu.memory_space<vmem>>, vector<16x96xf32>,
    return
  }
  func.func @transform_0(%arg0: i32, %arg1: i32) -> (i32, i32) {
    %c0_i32 = arith.constant 0 : i32
    %c0_i32_0 = arith.constant 0 : i32
    return %arg0, %c0_i32 : i32, i32
  }
  func.func @transform_1(%arg0: i32, %arg1: i32) -> (i32, i32) {
    %c0_i32 = arith.constant 0 : i32
    %c0_i32_0 = arith.constant 0 : i32
    %c0_i32_1 = arith.constant 0 : i32
    return %c0_i32, %c0_i32_0 : i32, i32
  }
  func.func @transform_2(%arg0: i32, %arg1: i32) -> (i32, i32) {
    %c0_i32 = arith.constant 0 : i32
    %c0_i32_0 = arith.constant 0 : i32
    %c0_i32_1 = arith.constant 0 : i32
    return %c0_i32, %c0_i32_0 : i32, i32
  }
  func.func @transform_3(%arg0: i32, %arg1: i32) -> (i32, i32) {
    %c0_i32 = arith.constant 0 : i32
    %c0_i32_0 = arith.constant 0 : i32
    return %c0_i32, %arg1 : i32, i32
  }
  func.func @transform_4(%arg0: i32, %arg1: i32) -> (i32, i32) {
    %c0_i32 = arith.constant 0 : i32
    %c0_i32_0 = arith.constant 0 : i32
    return %c0_i32, %arg1 : i32, i32
  }
  func.func @transform_5(%arg0: i32, %arg1: i32) -> (i32, i32) {
    %c0_i32 = arith.constant 0 : i32
    return %arg0, %arg1 : i32, i32
  }
}

</mosaic_0001>

<llo_original>
// kernel: tpu_custom_call.1
$region0: #{tpu_custom_call.1}
  #allocation0 [shape = 'u32[]', space=smem, size = 0x4, offset = 0x4, fixed_abs, tag = 'smem constant byte address 0x4 - core index']
  #allocation1 [shape = 'u32[144,128]{1,0:T(1,128)}', space=vmem, size = 0x12000, scoped, tag = 'internal scratch']
  #allocation2 [shape = 'bf16[16,32]{1,0:T(16,128)(2,1)}', space=vmem, size = 0x1000, scoped, tag = 'scratch operand']
  %s0 = inlined_call_operand.hbm [shape: f32[16,32], index: 0, kind: input, shape index: {}]
  %s1 = inlined_call_operand.vmem [shape: f32[1,32], index: 1, kind: input, shape index: {}]
  %s2 = inlined_call_operand.vmem [shape: f32[1,32], index: 2, kind: input, shape index: {}]
  %s3 = inlined_call_operand.hbm [shape: bf16[32,96], index: 3, kind: input, shape index: {}]
  %s4 = inlined_call_operand.vmem [shape: f32[1,96], index: 4, kind: input, shape index: {}]
  %s5 = inlined_call_operand.hbm [shape: f32[16,96], index: 5, kind: output, shape index: {}]
  %s6 = sld [smem:[#allocation0]]
  $region42: #{tpu_custom_call.1} parent=0
    _
  %s8 = ssub.s32 1, %s6
  %s9 = scalar_select 0, %s8, %s6
  $region1: #{tpu_custom_call.1} parent=0
    #allocation3 [shape = 'u8[8192]{0}', space=vmem, size = 0x2000, scoped, tag = 'input window, operand 0, single buffered']
    #allocation4 [shape = 's32[1]{0}', space=sflag, size = 0x4, scoped, tag = 'scoped memory for tpu_custom_call.1']
    #allocation5 [shape = 's32[1]{0}', space=sflag, size = 0x4, scoped, tag = 'scoped memory for tpu_custom_call.1']
    #allocation6 [shape = 'u8[8192]{0}', space=vmem, size = 0x2000, scoped, tag = 'input window, operand 3, single buffered']
    #allocation7 [shape = 's32[1]{0}', space=sflag, size = 0x4, scoped, tag = 'scoped memory for tpu_custom_call.1']
    #allocation8 [shape = 'u8[8192]{0}', space=vmem, size = 0x2000, scoped, tag = 'output window, operand 0, single buffered']
    %10 = vsyncpa [#allocation4], 0
    %11 = vsyncpa [#allocation7], 0
    %12 = vsyncpa [#allocation5], 0
    // Predicated region
    $region2: #{tpu_custom_call.1} parent=1 // pred_check
      _
    $region3: #{tpu_custom_call.1} parent=1 // pred_check_branch
      %14 = sbr.rel (0) target = $region5
    $region4: #{tpu_custom_call.1} parent=1 // pred_region
      %s16 = ssub.s32 256, 256
      %17 = vsyncadd [#allocation4], %s16
      %s18 = sshll.u32 [#allocation3], 4
      %s19 = int_to_ptr.vmem [resolvable:$true] %s18
      %24 = dma.hbm_to_vmem [thread:$0]  %s0, 256, %s19, [#allocation4], 128, 128, 8
    $region5: #{tpu_custom_call.1} parent=1 // pred_fallthru
      _
    // Predicated region
    $region6: #{tpu_custom_call.1} parent=1 // pred_check
      _
    $region7: #{tpu_custom_call.1} parent=1 // pred_check_branch
      %26 = sbr.rel (0) target = $region9
    $region8: #{tpu_custom_call.1} parent=1 // pred_region
      _
    $region9: #{tpu_custom_call.1} parent=1 // pred_fallthru
      _
    // Predicated region
    $region10: #{tpu_custom_call.1} parent=1 // pred_check
      _
    $region11: #{tpu_custom_call.1} parent=1 // pred_check_branch
      %28 = sbr.rel (0) target = $region13
    $region12: #{tpu_custom_call.1} parent=1 // pred_region
      _
    $region13: #{tpu_custom_call.1} parent=1 // pred_fallthru
      _
    // Predicated region
    $region14: #{tpu_custom_call.1} parent=1 // pred_check
      _
    $region15: #{tpu_custom_call.1} parent=1 // pred_check_branch
      %30 = sbr.rel (0) target = $region17
    $region16: #{tpu_custom_call.1} parent=1 // pred_region
      %s32 = ssub.s32 256, 256
      %33 = vsyncadd [#allocation7], %s32
      %s34 = sshll.u32 [#allocation6], 4
      %s35 = int_to_ptr.vmem [resolvable:$true] %s34
      %40 = dma.hbm_to_vmem [thread:$0]  %s3, 256, %s35, [#allocation7], 64, 64, 4
    $region17: #{tpu_custom_call.1} parent=1 // pred_fallthru
      _
    // Predicated region
    $region18: #{tpu_custom_call.1} parent=1 // pred_check
      _
    $region19: #{tpu_custom_call.1} parent=1 // pred_check_branch
      %42 = sbr.rel (0) target = $region21
    $region20: #{tpu_custom_call.1} parent=1 // pred_region
      _
    $region21: #{tpu_custom_call.1} parent=1 // pred_fallthru
      _
    // Predicated region
    $region22: #{tpu_custom_call.1} parent=1 // pred_check
      _
    $region23: #{tpu_custom_call.1} parent=1 // pred_check_branch
      %44 = sbr.rel (0) target = $region25
    $region24: #{tpu_custom_call.1} parent=1 // pred_region
      %45 = dma.done [#allocation4], 256
    $region25: #{tpu_custom_call.1} parent=1 // pred_fallthru
      _
    // Predicated region
    $region26: #{tpu_custom_call.1} parent=1 // pred_check
      _
    $region27: #{tpu_custom_call.1} parent=1 // pred_check_branch
      %47 = sbr.rel (0) target = $region29
    $region28: #{tpu_custom_call.1} parent=1 // pred_region
      %48 = dma.done [#allocation7], 256
    $region29: #{tpu_custom_call.1} parent=1 // pred_fallthru
      _
    %p50 = scmp.eq.s32.totalorder 0, 0
    // Predicated region
    $region30: #{tpu_custom_call.1} parent=1 // pred_check
      %p51 = pneg %p50
    $region31: #{tpu_custom_call.1} parent=1 // pred_check_branch
      %53 = sbr.rel (%p51) target = $region33
    $region32: #{tpu_custom_call.1} parent=1 // pred_region
      %v54 = vld [vmem:[#allocation3] sm:$0xff]
      %v55 = vld [vmem:[#allocation3 + $0x8] sm:$0xff]
      %vm56 = vcmask 261120
      %v57 = vsel %vm56, %v54, 0.0
      %58 = vadd.xlane.f32.xlu0 %v57
      %v59 = vpop.xlane.xlu0 %58
      %v60 = vsel %vm56, %v55, 0.0
      %61 = vadd.xlane.f32.xlu0 %v60
      %v62 = vpop.xlane.xlu0 %61
      %v63 = vrcp.pop 32.0
      %v64 = vmul.f32 %v59, %v63
      %v65 = vmul.f32 %v62, %v63
      %v66 = vsub.f32 %v54, %v64
      %v67 = vsub.f32 %v55, %v65
      %v68 = vmul.f32 %v66, %v66
      %v69 = vmul.f32 %v67, %v67
      %v70 = vsel %vm56, %v68, 0.0
      %71 = vadd.xlane.f32.xlu0 %v70
      %v72 = vpop.xlane.xlu0 %71
      %v73 = vsel %vm56, %v69, 0.0
      %74 = vadd.xlane.f32.xlu0 %v73
      %v75 = vpop.xlane.xlu0 %74
      %v76 = vmul.f32 %v72, %v63
      %v77 = vmul.f32 %v75, %v63
      %v78 = vadd.f32 %v76, 1e-05
      %v79 = vadd.f32 %v77, 1e-05
      %v80 = vrsqrt.pop %v78
      %v81 = vrsqrt.pop %v79
      %v82 = vmul.f32 %v66, %v80
      %v83 = vmul.f32 %v67, %v81
      %v84 = vld [vmem:[%s1] sm:$0x1]
      %v86 = vlaneseq
      %v87 = vshrl.u32 %v86, 7
      %v88 = vsub.s32 0, %v87
      %v89 = vrot.slane %v84, %v88
      %v91 = vmul.f32 %v82, %v89
      %v92 = vmul.f32 %v83, %v89
      %v93 = vld [vmem:[%s2] sm:$0x1]
      %v95 = vlaneseq
      %v96 = vshrl.u32 %v95, 7
      %v97 = vsub.s32 0, %v96
      %v98 = vrot.slane %v93, %v97
      %v100 = vadd.f32 %v91, %v98
      %v101 = vadd.f32 %v92, %v98
      %v102 = vpack.c.bf16 %v101, %v100
      %103 = vst.msk [vmem:[#allocation2] sm:$0xff] %vm56, %v102
    $region33: #{tpu_custom_call.1} parent=1 // pred_fallthru
      _
    %v104 = vld [vmem:[#allocation2] sm:$0xff]
    %v105 = vld [vmem:[#allocation6] sm:$0xf]
    %v106 = vld [vmem:[#allocation6 + $0x4] sm:$0xf]
    %v107 = vld [vmem:[#allocation6 + $0x8] sm:$0xf]
    %v108 = vld [vmem:[#allocation6 + $0xc] sm:$0xf]
    %v109 = vld [vmem:[%s4] sm:$0x1]
    %v111 = vlaneseq
    %v112 = vshrl.u32 %v111, 7
    %v113 = vsub.s32 0, %v112
    %v114 = vrot.slane %v109, %v113
    %v120 = vunpack.c.l.b16 %v105
    %v121 = vunpack.c.l.b16 %v106
    %v122 = vunpack.c.l.b16 %v107
    %v123 = vunpack.c.l.b16 %v108
    %v124 = vpack.c.b16 %v121, %v120
    %v125 = vpack.c.b16 %v123, %v122
    %vm128 = vcmask 261120
    %v130 = vsel %vm128, %v104, 0
    %132 = vmatprep.subr.bf16.mxu0 0
    %133 = vmatpush1.bf16.msra.mxu0 %v124
    %134 = vmatprep.subr.bf16.mxu0 0
    %135 = vmatpush1.bf16.msra.mxu0 %v125
    %136 = vmatprep.subr.bf16.mxu0 0
    %137 = vmatpush1.bf16.msra.mxu0 0
    %138 = vmatprep.subr.bf16.mxu0 0
    %139 = vmatpush1.bf16.msra.mxu0 0
    %140 = vmatprep.subr.bf16.mxu0 0
    %141 = vmatpush1.bf16.msra.mxu0 0
    %142 = vmatprep.subr.bf16.mxu0 0
    %143 = vmatpush1.bf16.msra.mxu0 0
    %144 = vmatprep.subr.bf16.mxu0 0
    %145 = vmatpush1.bf16.msra.mxu0 0
    %146 = vmatprep.subr.bf16.mxu0 0
    %147 = vmatpush1.bf16.msra.mxu0 0
    %148 = vmatprep.subr.bf16.mxu0 0
    %149 = vmatpush1.bf16.msra.mxu0 0
    %150 = vmatprep.subr.bf16.mxu0 0
    %151 = vmatpush1.bf16.msra.mxu0 0
    %152 = vmatprep.subr.bf16.mxu0 0
    %153 = vmatpush1.bf16.msra.mxu0 0
    %154 = vmatprep.subr.bf16.mxu0 0
    %155 = vmatpush1.bf16.msra.mxu0 0
    %156 = vmatprep.subr.bf16.mxu0 0
    %157 = vmatpush1.bf16.msra.mxu0 0
    %158 = vmatprep.subr.bf16.mxu0 0
    %159 = vmatpush1.bf16.msra.mxu0 0
    %160 = vmatprep.subr.bf16.mxu0 0
    %161 = vmatpush1.bf16.msra.mxu0 0
    %162 = vmatprep.subr.bf16.mxu0 0
    %163 = vmatpush1.bf16.msra.mxu0 0
    %164 = vmatprep.mubr.bf16.mxu0 0
    %165 = vmatmul.mubr.bf16.gmra.mrb[0].mxu0 %v130
    %v166 = vpop.f32.mrb[0].mxu0
    %v167 = vadd.f32 %v114, %v166
    %v168 = vpop.f32.mrb[0].mxu0
    %v169 = vpop.f32.mrb[0].mxu0
    %v170 = vadd.f32 %v114, %v169
    %v171 = vpop.f32.mrb[0].mxu0
    %172 = vdwg.mxu0
    %vm173 = vcmask 785408
    %174 = vst.msk [vmem:[#allocation8] sm:$0xff] %vm173, %v167
    %175 = vst.msk [vmem:[#allocation8 + $0x8] sm:$0xff] %vm173, %v170
    // Predicated region
    $region34: #{tpu_custom_call.1} parent=1 // pred_check
      _
    $region35: #{tpu_custom_call.1} parent=1 // pred_check_branch
      %177 = sbr.rel (0) target = $region37
    $region36: #{tpu_custom_call.1} parent=1 // pred_region
      %s179 = ssub.s32 256, 256
      %180 = vsyncadd [#allocation5], %s179
      %s181 = sshll.u32 [#allocation8], 4
      %s182 = int_to_ptr.vmem [resolvable:$true] %s181
      %187 = dma.vmem_to_hbm [thread:$0]  %s182, 256, %s5, [#allocation5], 128, 128, 8
    $region37: #{tpu_custom_call.1} parent=1 // pred_fallthru
      _
    // Predicated region
    $region38: #{tpu_custom_call.1} parent=1 // pred_check
      _
    $region39: #{tpu_custom_call.1} parent=1 // pred_check_branch
      %189 = sbr.rel (0) target = $region41
    $region40: #{tpu_custom_call.1} parent=1 // pred_region
      %190 = dma.done [#allocation5], 256
    $region41: #{tpu_custom_call.1} parent=1 // pred_fallthru
      _
    %191 = vsyncpa [#allocation4], 1
    %192 = vsyncpa [#allocation7], 1
    %193 = vsyncpa [#allocation5], 1

</llo_original>
